<compile_context>
chip_gen: v5e
topology: v5e:2x2
jax: 0.10.0
libtpu: 0.0.40
codegen_flags: <defaults>
</compile_context>

<pallas_src>
import functools
import math

import jax
import jax.numpy as jnp
import numpy as np
from jax.experimental import pallas as pl
from jax.experimental.pallas import tpu as pltpu


# ~4 MiB output block: big enough to sit at the HBM-write roofline on
# v5e/v6e/v7x, small enough that the double-buffered block plus the constant
# scatter matrix stays under v5e's 16 MiB scoped-VMEM default and within v7x's
# 64 MiB total VMEM without touching vmem_limit_bytes.
_TARGET_BLOCK_BYTES = 4 << 20
_MAX_PACKED_WIDTH = 1024          # target lanes/row when widening the packing
_MAX_SCATTER_BYTES = 2 << 20      # cap on the constant diag-scatter matrix


def _round_up(x: int, m: int) -> int:
    return ((x + m - 1) // m) * m


def _round_down(x: int, m: int) -> int:
    return (x // m) * m


def _choose_packing(dd: int, b: int) -> int:
    """Matrices packed per output row.  Always divides b, so the packed 2-D
    output is byte-identical to (..., d, d) and needs no trailing slice."""
    if b <= 1 or dd % 128 == 0:
        return 1                                   # rows already lane-dense
    p0 = 128 // math.gcd(dd, 128)                  # minimal p with (p*dd)%128==0
    w0 = p0 * dd
    if b % p0 == 0 and w0 <= 8192 and p0 * w0 * 4 <= _MAX_SCATTER_BYTES:
        # Lane-dense rows; widen toward ~_MAX_PACKED_WIDTH lanes with a factor
        # that still divides the batch.
        q = b // p0
        for f in range(max(1, min(_MAX_PACKED_WIDTH // w0, q)), 0, -1):
            p = p0 * f
            if q % f == 0 and p * (p * dd) * 4 <= _MAX_SCATTER_BYTES:
                return p
        return p0
    # Fallback: largest divisor of b with a modest row width.  Rows are only
    # partially lane-dense, but much better than one (d,d) matrix per row for
    # small odd d, and there is still no output padding/copy.
    for p in range(max(1, min(_MAX_PACKED_WIDTH // dd, b)), 1, -1):
        if b % p == 0:
            return p
    return 1


def _diag_scatter(d: int, p: int) -> np.ndarray:
    """S[q, q*d*d + i*(d+1)] = 1: scatters p scalars onto p matrix diagonals."""
    dd = d * d
    s = np.zeros((p, p * dd), dtype=np.float32)
    q = np.repeat(np.arange(p), d)
    i = np.tile(np.arange(d), p)
    s[q, q * dd + i * (d + 1)] = 1.0
    return s


def _iso_cov_kernel(x_ref, s_ref, o_ref, *, packed: bool):
    # x_ref : (tb, p)   raw variances (any dtype; cast + exp here, on b
    #                   elements rather than b*d*d)
    # s_ref : (p, tw)   constant 0/1 diagonal-scatter block
    # o_ref : (tb, tw)  p flattened (d, d) diagonal matrices per row
    e = jnp.exp(x_ref[...].astype(jnp.float32))
    if packed:
        # One small matmul replicates each scalar onto its d diagonal lanes and
        # zeros the rest; slack-hidden under the output write-back DMA.
        y = jnp.dot(e, s_ref[...], preferred_element_type=jnp.float32)
    else:
        # p == 1: pure-VPU lane broadcast against the constant diagonal mask.
        y = e * s_ref[...]
    o_ref[...] = y.astype(o_ref.dtype)


def isotropic_covariance_layer(raw_variance: jnp.ndarray, d: int,
                               out_dtype=None) -> jnp.ndarray:
    """Pallas TPU implementation of IsotropicCovarianceLayer.forward.

    out_dtype: optional narrower output dtype (e.g. jnp.bfloat16); the output
    bytes ARE the roofline, so halving the element size ~halves the runtime.
    Defaults to the input dtype.  Non-floating inputs are promoted to float32
    (torch would instead surface a dtype issue).
    """
    batch_shape = raw_variance.shape
    dd = d * d
    b = int(np.prod(batch_shape)) if batch_shape else 1

    if out_dtype is None:
        out_dtype = (raw_variance.dtype
                     if jnp.issubdtype(raw_variance.dtype, jnp.floating)
                     else jnp.float32)
    out_dtype = jnp.dtype(out_dtype)

    if b == 0:
        return jnp.zeros((*batch_shape, d, d), out_dtype)

    p = _choose_packing(dd, b)         # p | b  =>  (rows, width) is the same
    width = p * dd                     # bytes as (..., d, d): reshape is free
    rows = b // p

    # Sublane multiple compatible with the narrowest dtype involved.
    in_isize = jnp.dtype(raw_variance.dtype).itemsize
    out_isize = out_dtype.itemsize
    mult = max(8, 32 // max(1, min(4, in_isize, out_isize)))

    # Row tile from a VMEM byte budget (not a fixed 512 rows); width tile only
    # if even a minimal-height block would blow the budget (huge d).
    row_bytes = width * out_isize
    tb = _round_down(_TARGET_BLOCK_BYTES // row_bytes, mult)
    if tb >= mult:
        tw = width
    else:
        tb = mult
        tw = max(128, _round_down(_TARGET_BLOCK_BYTES // (mult * out_isize), 128))
        tw = min(tw, _round_up(width, 128))
    tb = min(tb, _round_up(rows, mult))

    # Megacore (v7x): keep >= 2 row steps when the output is big enough that
    # splitting across the two TensorCores beats the ~0.35 us per-step cost.
    if pl.cdiv(rows, tb) < 2 and rows > mult and rows * row_bytes >= (1 << 20):
        tb = min(tb, _round_up(pl.cdiv(rows, 2), mult))

    grid = (pl.cdiv(rows, tb), pl.cdiv(width, tw))

    x2d = raw_variance.reshape(rows, p)            # free reshape, no padding
    s_mat = jnp.asarray(_diag_scatter(d, p))

    out2d = pl.pallas_call(
        functools.partial(_iso_cov_kernel, packed=(p > 1)),
        out_shape=jax.ShapeDtypeStruct((rows, width), out_dtype),
        grid_spec=pltpu.PrefetchScalarGridSpec(
            num_scalar_prefetch=0,
            grid=grid,
            in_specs=[
                pl.BlockSpec((tb, p), lambda i, j: (i, 0)),
                pl.BlockSpec((p, tw), lambda i, j: (0, j)),
            ],
            out_specs=pl.BlockSpec((tb, tw), lambda i, j: (i, j)),
        ),
        compiler_params=pltpu.CompilerParams(
            dimension_semantics=("parallel", "parallel"),
        ),
    )(x2d, s_mat)

    # rows * width == b * d * d exactly (p divides b), so this reshape is
    # metadata-only -- no trailing slice, no extra HBM copy.
    return out2d.reshape(*batch_shape, d, d)


def _reference(raw_variance: jnp.ndarray, d: int) -> jnp.ndarray:
    """Plain-JAX mirror of diag_embed(expand(raw_variance, d).exp())."""
    e = jnp.exp(raw_variance.astype(jnp.float32))
    return e[..., None, None] * jnp.eye(d, dtype=jnp.float32)


if __name__ == "__main__":
    key = jax.random.PRNGKey(0)
    k1, k2, k3, k4 = jax.random.split(key, 4)

    # d=4: lane-dense packed path (p=32 -> 512-lane rows, MXU scatter).
    d = 4
    x = jax.random.normal(k1, (2, 16), dtype=jnp.float32)
    out = jax.block_until_ready(isotropic_covariance_layer(x, d))
    assert out.shape == (2, 16, d, d)
    np.testing.assert_allclose(np.asarray(out), np.asarray(_reference(x, d)),
                               rtol=1e-5, atol=1e-5)

    # d=5, b=7: divisor-of-b packing fallback (p=7, 175-lane rows), no output copy.
    d2 = 5
    x2 = jax.random.normal(k2, (7,), dtype=jnp.float32)
    out2 = jax.block_until_ready(isotropic_covariance_layer(x2, d2))
    assert out2.shape == (7, d2, d2)
    np.testing.assert_allclose(np.asarray(out2), np.asarray(_reference(x2, d2)),
                               rtol=1e-5, atol=1e-5)

    # d=16 (d*d % 128 == 0): unpacked, already lane-dense, pure-VPU mask path.
    d3 = 16
    x3 = jax.random.normal(k3, (4, 3), dtype=jnp.float32)
    out3 = jax.block_until_ready(isotropic_covariance_layer(x3, d3))
    assert out3.shape == (4, 3, d3, d3)
    np.testing.assert_allclose(np.asarray(out3), np.asarray(_reference(x3, d3)),
                               rtol=1e-5, atol=1e-5)

    # bf16 input -> bf16 output (exp in f32 inside the kernel, then downcast).
    d4 = 4
    x4 = jax.random.normal(k4, (3, 8), dtype=jnp.bfloat16)
    out4 = jax.block_until_ready(isotropic_covariance_layer(x4, d4))
    assert out4.shape == (3, 8, d4, d4) and out4.dtype == jnp.bfloat16
    np.testing.assert_allclose(np.asarray(out4, dtype=np.float32),
                               np.asarray(_reference(x4, d4)),
                               rtol=2e-2, atol=2e-2)

    print("KERNEL_OK")
</pallas_src>

<mosaic_0001>
module attributes {stable_mosaic.version = 11 : i64} {
  func.func @_iso_cov_kernel(%arg0: i32, %arg1: i32, %arg2: memref<8x32xf32, #tpu.memory_space<vmem>>, %arg3: memref<32x512xf32, #tpu.memory_space<vmem>>, %arg4: memref<8x512xf32, #tpu.memory_space<vmem>>) attributes {dimension_semantics = [#tpu.dimension_semantics<parallel>, #tpu.dimension_semantics<parallel>], iteration_bounds = array<i64: 1, 1>, scalar_prefetch = 0 : i64, scratch_operands = 0 : i64, tpu.core_type = #tpu.core_type<tc>, window_params = [{transform_indices = @transform_0, window_bounds = array<i64: 8, 32>}, {transform_indices = @transform_1, window_bounds = array<i64: 32, 512>}, {transform_indices = @transform_2, window_bounds = array<i64: 8, 512>}]} {
    %c0 = arith.constant 0 : index
    %c0_0 = arith.constant 0 : index
    %0 = vector.load %arg2[%c0, %c0_0] : memref<8x32xf32, #tpu.memory_space<vmem>>, vector<8x32xf32>
    %1 = math.exp %0 : vector<8x32xf32>
    %c0_1 = arith.constant 0 : index
    %c0_2 = arith.constant 0 : index
    %2 = vector.load %arg3[%c0_1, %c0_2] : memref<32x512xf32, #tpu.memory_space<vmem>>, vector<32x512xf32>
    %cst = arith.constant dense<0.000000e+00> : vector<8x512xf32>
    %3 = tpu.matmul %1, %2, %cst {dimension_numbers = #tpu.dot_dimension_numbers<[1], [0], [0], [1], [0, 0, 1, 1], [], []>} : vector<8x32xf32>, vector<32x512xf32>, vector<8x512xf32> -> vector<8x512xf32>
    %c0_3 = arith.constant 0 : index
    %c0_4 = arith.constant 0 : index
    %4 = vector.load %arg4[%c0_3, %c0_4] : memref<8x512xf32, #tpu.memory_space<vmem>>, vector<8x512xf32>
    tpu.vector_store %arg4[%c0_3, %c0_4], %3 {strides = array<i32>} : memref<8x512xf32, #tpu.memory_space<vmem>>, vector<8x512xf32>,
    return
  }
  func.func @transform_0(%arg0: i32, %arg1: i32) -> (i32, i32) {
    %c0_i32 = arith.constant 0 : i32
    %c0_i32_0 = arith.constant 0 : i32
    return %arg0, %c0_i32 : i32, i32
  }
  func.func @transform_1(%arg0: i32, %arg1: i32) -> (i32, i32) {
    %c0_i32 = arith.constant 0 : i32
    %c0_i32_0 = arith.constant 0 : i32
    return %c0_i32, %arg1 : i32, i32
  }
  func.func @transform_2(%arg0: i32, %arg1: i32) -> (i32, i32) {
    %c0_i32 = arith.constant 0 : i32
    return %arg0, %arg1 : i32, i32
  }
}

</mosaic_0001>

<llo_original>
// kernel: tpu_custom_call.1
$region0: #{tpu_custom_call.1}
  #allocation0 [shape = 'u32[]', space=smem, size = 0x4, offset = 0x4, fixed_abs, tag = 'smem constant byte address 0x4 - core index']
  #allocation1 [shape = 'u32[72,128]{1,0:T(1,128)}', space=vmem, size = 0x9000, scoped, tag = 'internal scratch']
  %s0 = inlined_call_operand.hbm [shape: f32[1,32], index: 0, kind: input, shape index: {}]
  %s1 = inlined_call_operand.hbm [shape: f32[32,512], index: 1, kind: input, shape index: {}]
  %s2 = inlined_call_operand.hbm [shape: f32[1,512], index: 2, kind: output, shape index: {}]
  %s3 = sld [smem:[#allocation0]]
  $region26: #{tpu_custom_call.1} parent=0
    _
  %s5 = ssub.s32 1, %s3
  %s6 = scalar_select 0, %s5, %s3
  $region1: #{tpu_custom_call.1} parent=0
    #allocation2 [shape = 'u8[4096]{0}', space=vmem, size = 0x1000, scoped, tag = 'input window, operand 0, single buffered']
    #allocation3 [shape = 's32[1]{0}', space=sflag, size = 0x4, scoped, tag = 'scoped memory for tpu_custom_call.1']
    #allocation4 [shape = 's32[1]{0}', space=sflag, size = 0x4, scoped, tag = 'scoped memory for tpu_custom_call.1']
    #allocation5 [shape = 'u8[65536]{0}', space=vmem, size = 0x10000, scoped, tag = 'input window, operand 1, single buffered']
    #allocation6 [shape = 's32[1]{0}', space=sflag, size = 0x4, scoped, tag = 'scoped memory for tpu_custom_call.1']
    #allocation7 [shape = 'u8[16384]{0}', space=vmem, size = 0x4000, scoped, tag = 'output window, operand 0, single buffered']
    %7 = vsyncpa [#allocation3], 0
    %8 = vsyncpa [#allocation6], 0
    %9 = vsyncpa [#allocation4], 0
    // Predicated region
    $region2: #{tpu_custom_call.1} parent=1 // pred_check
      _
    $region3: #{tpu_custom_call.1} parent=1 // pred_check_branch
      %11 = sbr.rel (0) target = $region5
    $region4: #{tpu_custom_call.1} parent=1 // pred_region
      %13 = vsyncadd [#allocation3], 112
      %s14 = sshll.u32 %s0, 4
      %s15 = int_to_ptr.hbm [resolvable:$true] %s14
      %s16 = sshll.u32 [#allocation2], 4
      %s17 = int_to_ptr.vmem [resolvable:$true] %s16
      %22 = dma.hbm_to_vmem [thread:$0]  %s15, 16, %s17, [#allocation3], 16, 16, 1
    $region5: #{tpu_custom_call.1} parent=1 // pred_fallthru
      _
    // Predicated region
    $region6: #{tpu_custom_call.1} parent=1 // pred_check
      _
    $region7: #{tpu_custom_call.1} parent=1 // pred_check_branch
      %24 = sbr.rel (0) target = $region9
    $region8: #{tpu_custom_call.1} parent=1 // pred_region
      %26 = vsyncadd [#allocation6], 0
      %s27 = sshll.u32 %s1, 4
      %s28 = int_to_ptr.hbm [resolvable:$true] %s27
      %s29 = sshll.u32 [#allocation5], 4
      %s30 = int_to_ptr.vmem [resolvable:$true] %s29
      %35 = dma.hbm_to_vmem [thread:$0]  %s28, 2048, %s30, [#allocation6], 512, 512, 32
    $region9: #{tpu_custom_call.1} parent=1 // pred_fallthru
      _
    // Predicated region
    $region10: #{tpu_custom_call.1} parent=1 // pred_check
      _
    $region11: #{tpu_custom_call.1} parent=1 // pred_check_branch
      %37 = sbr.rel (0) target = $region13
    $region12: #{tpu_custom_call.1} parent=1 // pred_region
      %39 = dma.done [#allocation3], 128
    $region13: #{tpu_custom_call.1} parent=1 // pred_fallthru
      _
    // Predicated region
    $region14: #{tpu_custom_call.1} parent=1 // pred_check
      _
    $region15: #{tpu_custom_call.1} parent=1 // pred_check_branch
      %41 = sbr.rel (0) target = $region17
    $region16: #{tpu_custom_call.1} parent=1 // pred_region
      %43 = dma.done [#allocation6], 2048
    $region17: #{tpu_custom_call.1} parent=1 // pred_fallthru
      _
    %v44 = vld [vmem:[#allocation2] sm:$0xff]
    %v45 = vmul.f32 %v44, 1.442695
    %v46 = vpow.pop %v45
    %v47 = vld [vmem:[#allocation5] sm:$0xff]
    %v48 = vld [vmem:[#allocation5 + $0x8] sm:$0xff]
    %v49 = vld [vmem:[#allocation5 + $0x10] sm:$0xff]
    %v50 = vld [vmem:[#allocation5 + $0x18] sm:$0xff]
    %v51 = vld [vmem:[#allocation5 + $0x20] sm:$0xff]
    %v52 = vld [vmem:[#allocation5 + $0x28] sm:$0xff]
    %v53 = vld [vmem:[#allocation5 + $0x30] sm:$0xff]
    %v54 = vld [vmem:[#allocation5 + $0x38] sm:$0xff]
    %v55 = vld [vmem:[#allocation5 + $0x40] sm:$0xff]
    %v56 = vld [vmem:[#allocation5 + $0x48] sm:$0xff]
    %v57 = vld [vmem:[#allocation5 + $0x50] sm:$0xff]
    %v58 = vld [vmem:[#allocation5 + $0x58] sm:$0xff]
    %v59 = vld [vmem:[#allocation5 + $0x60] sm:$0xff]
    %v60 = vld [vmem:[#allocation5 + $0x68] sm:$0xff]
    %v61 = vld [vmem:[#allocation5 + $0x70] sm:$0xff]
    %v62 = vld [vmem:[#allocation5 + $0x78] sm:$0xff]
    %vm63 = vcmask 261120
    %v65 = vsel %vm63, %v46, 0
    %67 = vmatpush.msra.mxu0 0.0
    %68 = vmatpush.msra.mxu0 0.0
    %69 = vmatpush.msra.mxu0 0.0
    %70 = vmatpush.msra.mxu0 0.0
    %71 = vmatpush.msra.mxu0 0.0
    %72 = vmatpush.msra.mxu0 0.0
    %73 = vmatpush.msra.mxu0 0.0
    %74 = vmatpush.msra.mxu0 0.0
    %75 = vmatpush.msra.mxu0 0.0
    %76 = vmatpush.msra.mxu0 0.0
    %77 = vmatpush.msra.mxu0 0.0
    %78 = vmatpush.msra.mxu0 0.0
    %79 = vmatpush.msra.mxu0 %v59
    %80 = vmatpush.msra.mxu0 %v55
    %81 = vmatpush.msra.mxu0 %v51
    %82 = vmatpush.msra.mxu0 %v47
    %83 = vmatmul.f32.gmra.mxu0 %v65
    %v84 = vpop.f32.mrf.mxu0
    %v85 = vadd.f32 0.0, %v84
    %86 = vdwg.mxu0
    %87 = vmatpush.msra.mxu0 0.0
    %88 = vmatpush.msra.mxu0 0.0
    %89 = vmatpush.msra.mxu0 0.0
    %90 = vmatpush.msra.mxu0 0.0
    %91 = vmatpush.msra.mxu0 0.0
    %92 = vmatpush.msra.mxu0 0.0
    %93 = vmatpush.msra.mxu0 0.0
    %94 = vmatpush.msra.mxu0 0.0
    %95 = vmatpush.msra.mxu0 0.0
    %96 = vmatpush.msra.mxu0 0.0
    %97 = vmatpush.msra.mxu0 0.0
    %98 = vmatpush.msra.mxu0 0.0
    %99 = vmatpush.msra.mxu0 %v60
    %100 = vmatpush.msra.mxu0 %v56
    %101 = vmatpush.msra.mxu0 %v52
    %102 = vmatpush.msra.mxu0 %v48
    %103 = vmatmul.f32.gmra.mxu0 %v65
    %v104 = vpop.f32.mrf.mxu0
    %v105 = vadd.f32 0.0, %v104
    %106 = vdwg.mxu0
    %107 = vmatpush.msra.mxu0 0.0
    %108 = vmatpush.msra.mxu0 0.0
    %109 = vmatpush.msra.mxu0 0.0
    %110 = vmatpush.msra.mxu0 0.0
    %111 = vmatpush.msra.mxu0 0.0
    %112 = vmatpush.msra.mxu0 0.0
    %113 = vmatpush.msra.mxu0 0.0
    %114 = vmatpush.msra.mxu0 0.0
    %115 = vmatpush.msra.mxu0 0.0
    %116 = vmatpush.msra.mxu0 0.0
    %117 = vmatpush.msra.mxu0 0.0
    %118 = vmatpush.msra.mxu0 0.0
    %119 = vmatpush.msra.mxu0 %v61
    %120 = vmatpush.msra.mxu0 %v57
    %121 = vmatpush.msra.mxu0 %v53
    %122 = vmatpush.msra.mxu0 %v49
    %123 = vmatmul.f32.gmra.mxu0 %v65
    %v124 = vpop.f32.mrf.mxu0
    %v125 = vadd.f32 0.0, %v124
    %126 = vdwg.mxu0
    %127 = vmatpush.msra.mxu0 0.0
    %128 = vmatpush.msra.mxu0 0.0
    %129 = vmatpush.msra.mxu0 0.0
    %130 = vmatpush.msra.mxu0 0.0
    %131 = vmatpush.msra.mxu0 0.0
    %132 = vmatpush.msra.mxu0 0.0
    %133 = vmatpush.msra.mxu0 0.0
    %134 = vmatpush.msra.mxu0 0.0
    %135 = vmatpush.msra.mxu0 0.0
    %136 = vmatpush.msra.mxu0 0.0
    %137 = vmatpush.msra.mxu0 0.0
    %138 = vmatpush.msra.mxu0 0.0
    %139 = vmatpush.msra.mxu0 %v62
    %140 = vmatpush.msra.mxu0 %v58
    %141 = vmatpush.msra.mxu0 %v54
    %142 = vmatpush.msra.mxu0 %v50
    %143 = vmatmul.f32.gmra.mxu0 %v65
    %v144 = vpop.f32.mrf.mxu0
    %v145 = vadd.f32 0.0, %v144
    %146 = vdwg.mxu0
    %v151 = vrot.slane %v105, 7
    %v152 = vrot.slane %v125, 6
    %v153 = vrot.slane %v145, 5
    %vm154 = vcmask 1040384
    %v155 = vsel %vm154, %v85, %v151
    %vm156 = vcmask 1042434
    %v157 = vsel %vm156, %v152, %v153
    %vm158 = vcmask 1041408
    %v159 = vsel %vm158, %v155, %v157
    %vm160 = vcmask 1041409
    %v161 = vsel %vm160, %v85, %v151
    %vm162 = vcmask 1043459
    %v163 = vsel %vm162, %v152, %v153
    %vm164 = vcmask 1042433
    %v165 = vsel %vm164, %v161, %v163
    %v166 = vrot.slane %v165, 1
    %v167 = vsel %vm156, %v85, %v151
    %vm168 = vcmask 1044484
    %v169 = vsel %vm168, %v152, %v153
    %vm170 = vcmask 1043458
    %v171 = vsel %vm170, %v167, %v169
    %v172 = vrot.slane %v171, 2
    %v173 = vsel %vm162, %v85, %v151
    %vm174 = vcmask 1045509
    %v175 = vsel %vm174, %v152, %v153
    %vm176 = vcmask 1044483
    %v177 = vsel %vm176, %v173, %v175
    %v178 = vrot.slane %v177, 3
    %v179 = vsel %vm168, %v85, %v151
    %vm180 = vcmask 1046534
    %v181 = vsel %vm180, %v152, %v153
    %vm182 = vcmask 1045508
    %v183 = vsel %vm182, %v179, %v181
    %v184 = vrot.slane %v183, 4
    %v185 = vsel %vm174, %v85, %v151
    %vm186 = vcmask 1046528
    %v187 = vsel %vm186, %v153, %v152
    %vm188 = vcmask 1046533
    %v189 = vsel %vm188, %v185, %v187
    %v190 = vrot.slane %v189, 5
    %v191 = vsel %vm180, %v85, %v151
    %v192 = vsel %vm154, %v152, %v153
    %vm193 = vcmask 1045504
    %v194 = vsel %vm193, %v192, %v191
    %v195 = vrot.slane %v194, 6
    %v196 = vsel %vm186, %v151, %v85
    %v197 = vsel %vm160, %v152, %v153
    %vm198 = vcmask 1046529
    %v199 = vsel %vm198, %v197, %v196
    %v200 = vrot.slane %v199, 7
    %v209 = vlaneseq
    %vm210 = vcmp.ge.s32.totalorder %v209, 0
    %vm211 = vcmp.lt.s32.totalorder %v209, 512
    %vm212 = vmand %vm210, %vm211
    %213 = vst.msk [vmem:[#allocation7] sm:$0xf] %vm212, %v159
    %214 = vst.msk [vmem:[#allocation7 + $0x4] sm:$0xf] %vm212, %v166
    %215 = vst.msk [vmem:[#allocation7 + $0x8] sm:$0xf] %vm212, %v172
    %216 = vst.msk [vmem:[#allocation7 + $0xc] sm:$0xf] %vm212, %v178
    %217 = vst.msk [vmem:[#allocation7 + $0x10] sm:$0xf] %vm212, %v184
    %218 = vst.msk [vmem:[#allocation7 + $0x14] sm:$0xf] %vm212, %v190
    %219 = vst.msk [vmem:[#allocation7 + $0x18] sm:$0xf] %vm212, %v195
    %220 = vst.msk [vmem:[#allocation7 + $0x1c] sm:$0xf] %vm212, %v200
    // Predicated region
    $region18: #{tpu_custom_call.1} parent=1 // pred_check
      _
    $region19: #{tpu_custom_call.1} parent=1 // pred_check_branch
      %222 = sbr.rel (0) target = $region21
    $region20: #{tpu_custom_call.1} parent=1 // pred_region
      %224 = vsyncadd [#allocation4], 448
      %s225 = sshll.u32 [#allocation7], 4
      %s226 = int_to_ptr.vmem [resolvable:$true] %s225
      %s227 = sshll.u32 %s2, 4
      %s228 = int_to_ptr.hbm [resolvable:$true] %s227
      %233 = dma.vmem_to_hbm [thread:$0]  %s226, 64, %s228, [#allocation4], 64, 64, 4
    $region21: #{tpu_custom_call.1} parent=1 // pred_fallthru
      _
    // Predicated region
    $region22: #{tpu_custom_call.1} parent=1 // pred_check
      _
    $region23: #{tpu_custom_call.1} parent=1 // pred_check_branch
      %235 = sbr.rel (0) target = $region25
    $region24: #{tpu_custom_call.1} parent=1 // pred_region
      %237 = dma.done [#allocation4], 512
    $region25: #{tpu_custom_call.1} parent=1 // pred_fallthru
      _
    %238 = vsyncpa [#allocation3], 1
    %239 = vsyncpa [#allocation6], 1
    %240 = vsyncpa [#allocation4], 1

</llo_original>
